<compile_context>
chip_gen: v5e
topology: v5e:2x2
jax: 0.10.0
libtpu: 0.0.40
codegen_flags: <defaults>
</compile_context>

<pallas_src>
import math
from functools import partial

import jax
import jax.numpy as jnp
from jax.experimental import pallas as pl
from jax.experimental.pallas import tpu as pltpu


def _round_up(x, n):
    return (x + n - 1) // n * n


# ----------------------------------------------------------------------------
# predict path: x -> F.normalize(x)  (L2 row-normalize)
# ----------------------------------------------------------------------------
def _normalize_kernel(x_ref, o_ref):
    x = x_ref[...].astype(jnp.float32)
    # F.normalize(eps=1e-12): x / max(||x||, 1e-12) == x * rsqrt(max(||x||^2, 1e-24))
    sumsq = jnp.sum(x * x, axis=-1, keepdims=True)
    o_ref[...] = (x * jax.lax.rsqrt(jnp.maximum(sumsq, 1e-24))).astype(o_ref.dtype)


def normalize_embeddings(x):
    B, E = x.shape
    return pl.pallas_call(
        _normalize_kernel,
        out_shape=jax.ShapeDtypeStruct((B, E), x.dtype),
        grid_spec=pltpu.PrefetchScalarGridSpec(
            num_scalar_prefetch=0,
            grid=(1,),
            in_specs=[pl.BlockSpec((B, E), lambda i: (0, 0))],
            out_specs=pl.BlockSpec((B, E), lambda i: (0, 0)),
        ),
    )(x)


# ----------------------------------------------------------------------------
# train path: Arcface_Head
#   cosine = normalize(x) @ normalize(W).T
#   sine   = sqrt(clamp(1 - cosine^2, 0, 1))
#   phi    = cos(theta + m)        (with cosine - mm fallback past threshold)
#   out    = s * (one_hot * phi + (1 - one_hot) * cosine)
# ----------------------------------------------------------------------------
def _arcface_head_kernel(label_ref, x_ref, w_ref, o_ref,
                         *, s, cos_m, sin_m, th, mm, tn):
    # Normalize the embedding rows.  Recomputed per class tile: B*E is tiny
    # (one vreg per 8 rows), and a j==0-guarded VMEM scratch would not be
    # initialized on the second core when the parallel axis is megacore-split.
    x = x_ref[...].astype(jnp.float32)
    xn = x * jax.lax.rsqrt(
        jnp.maximum(jnp.sum(x * x, axis=-1, keepdims=True), 1e-24))

    # Normalize this tile of weight rows (rsqrt -> EUP slot, essentially free).
    w = w_ref[...].astype(jnp.float32)
    wn = w * jax.lax.rsqrt(
        jnp.maximum(jnp.sum(w * w, axis=-1, keepdims=True), 1e-24))

    # cosine = xn @ wn.T on the MXU without materializing the transpose:
    # contract the last (lane) dim of both operands -> (B, tn).
    cosine = jax.lax.dot_general(
        xn, wn,
        dimension_numbers=(((1,), (1,)), ((), ())),
        preferred_element_type=jnp.float32)

    sine = jnp.sqrt(jnp.clip(1.0 - cosine * cosine, 0.0, 1.0))
    phi = cosine * cos_m - sine * sin_m
    phi = jnp.where(cosine > th, phi, cosine - mm)

    # one-hot via comparison of global class index with the label
    j = pl.program_id(0)
    col = j * tn + jax.lax.broadcasted_iota(jnp.int32, cosine.shape, 1)
    one_hot = label_ref[...] == col            # label_ref: (B, 1) broadcasts

    o_ref[...] = (jnp.where(one_hot, phi, cosine) * s).astype(o_ref.dtype)


def arcface_head(x, label, weight, *, s=32.0, m=0.5, tn=512):
    """x: [B, E] float, label: [B] int, weight: [C, E] float/bf16 -> [B, C] f32."""
    B, E = x.shape
    C, E2 = weight.shape
    assert E == E2

    # Class tile: big enough to amortize per-step pipeline overhead and to give
    # wide lane-dense output stores; pad C on the host so the grid stays
    # rectangular for arbitrary class counts.
    tn = max(128, min(int(tn), _round_up(C, 128)))
    C_pad = _round_up(C, tn)
    if C_pad != C:
        weight = jnp.pad(weight, ((0, C_pad - C), (0, 0)))

    cos_m = math.cos(m)
    sin_m = math.sin(m)
    th = math.cos(math.pi - m)
    mm = math.sin(math.pi - m) * m

    label2d = label.astype(jnp.int32).reshape(B, 1)

    kernel = partial(_arcface_head_kernel,
                     s=float(s), cos_m=cos_m, sin_m=sin_m, th=th, mm=mm, tn=tn)

    w_bytes = weight.size * weight.dtype.itemsize
    cost = pl.CostEstimate(
        flops=2 * B * C_pad * E + 8 * B * C_pad,
        transcendentals=B * C_pad + C_pad + B,
        bytes_accessed=w_bytes + B * E * 4 + B * C_pad * 4 + B * 4,
    )

    out = pl.pallas_call(
        kernel,
        out_shape=jax.ShapeDtypeStruct((B, C_pad), jnp.float32),
        grid_spec=pltpu.PrefetchScalarGridSpec(
            num_scalar_prefetch=0,
            grid=(C_pad // tn,),
            in_specs=[
                pl.BlockSpec((B, 1), lambda j: (0, 0)),    # labels (fetched once)
                pl.BlockSpec((B, E), lambda j: (0, 0)),    # embeddings (fetched once)
                pl.BlockSpec((tn, E), lambda j: (j, 0)),   # streamed weight tile
            ],
            out_specs=pl.BlockSpec((B, tn), lambda j: (0, j)),
        ),
        compiler_params=pltpu.CompilerParams(
            dimension_semantics=("parallel",)),
        cost_estimate=cost,
    )(label2d, x, weight)

    return out[:, :C] if C_pad != C else out


# ----------------------------------------------------------------------------
# Arcface module wrapper (mobilefacenet config: embedding_size=128, s=32)
# ----------------------------------------------------------------------------
def arcface_forward(x_embed, y=None, *, weight=None, s=32.0, m=0.5,
                    mode="predict"):
    B = x_embed.shape[0]
    x = x_embed.reshape(B, -1)              # x.view(x.size()[0], -1)
    if mode == "predict":
        return normalize_embeddings(x)      # F.normalize(x)
    # Train path: the head kernel normalizes x in-kernel (equivalent to
    # F.normalize(x) followed by the head), dropping a kernel launch and a
    # [B, E] HBM round trip.
    return arcface_head(x, y, weight, s=s, m=m)


# ----------------------------------------------------------------------------
# pure-JAX reference for a sanity check
# ----------------------------------------------------------------------------
def _reference(x, label, weight, s, m):
    xn = x / jnp.maximum(jnp.linalg.norm(x, axis=1, keepdims=True), 1e-12)
    wn = weight / jnp.maximum(jnp.linalg.norm(weight, axis=1, keepdims=True), 1e-12)
    cosine = xn @ wn.T
    sine = jnp.sqrt(jnp.clip(1.0 - cosine ** 2, 0.0, 1.0))
    phi = cosine * math.cos(m) - sine * math.sin(m)
    phi = jnp.where(cosine > math.cos(math.pi - m), phi,
                    cosine - math.sin(math.pi - m) * m)
    one_hot = jax.nn.one_hot(label, weight.shape[0], dtype=jnp.float32)
    return (one_hot * phi + (1.0 - one_hot) * cosine) * s


if __name__ == "__main__":
    # mobilefacenet config: embedding_size=128, s=32, m=0.5
    # C deliberately NOT a multiple of the class tile to exercise padding.
    B, E, C = 8, 128, 1000
    s, m = 32.0, 0.5

    key = jax.random.PRNGKey(0)
    kx, kw, kl = jax.random.split(key, 3)

    # backbone output embeddings (stand-in for get_mbf(x).view(B, -1))
    x_embed = jax.random.normal(kx, (B, E), dtype=jnp.float32)

    # xavier_uniform_ init of the head weight, deterministic
    bound = math.sqrt(6.0 / (C + E))
    weight = jax.random.uniform(kw, (C, E), dtype=jnp.float32,
                                minval=-bound, maxval=bound)

    label = jax.random.randint(kl, (B,), 0, C, dtype=jnp.int32)

    # predict mode: normalized embedding
    emb = arcface_forward(x_embed, mode="predict")
    emb = jax.block_until_ready(emb)

    # train mode: arcface logits
    logits = arcface_forward(x_embed, label, weight=weight, s=s, m=m,
                             mode="train")
    logits = jax.block_until_ready(logits)

    # check against pure-JAX reference
    x_flat = x_embed.reshape(B, -1)
    ref_logits = _reference(x_flat, label, weight, s, m)
    ref_emb = x_flat / jnp.maximum(
        jnp.linalg.norm(x_flat, axis=1, keepdims=True), 1e-12)

    assert emb.shape == (B, E)
    assert logits.shape == (B, C)
    assert jnp.allclose(emb, ref_emb, atol=1e-5, rtol=1e-5)
    assert jnp.allclose(logits, ref_logits, atol=1e-4, rtol=1e-4)

    print("KERNEL_OK")
</pallas_src>

<mosaic_0001>
module attributes {stable_mosaic.version = 11 : i64} {
  func.func @_normalize_kernel(%arg0: i32, %arg1: memref<8x128xf32, #tpu.memory_space<vmem>>, %arg2: memref<8x128xf32, #tpu.memory_space<vmem>>) attributes {dimension_semantics = [#tpu.dimension_semantics<arbitrary>], iteration_bounds = array<i64: 1>, scalar_prefetch = 0 : i64, scratch_operands = 0 : i64, tpu.core_type = #tpu.core_type<tc>, window_params = [{pipeline_mode = #tpu.pipeline_mode<synchronous>, transform_indices = @transform_0, window_bounds = array<i64: 8, 128>}, {pipeline_mode = #tpu.pipeline_mode<synchronous>, transform_indices = @transform_1, window_bounds = array<i64: 8, 128>}]} {
    %c0 = arith.constant 0 : index
    %c0_0 = arith.constant 0 : index
    %0 = vector.load %arg1[%c0, %c0_0] : memref<8x128xf32, #tpu.memory_space<vmem>>, vector<8x128xf32>
    %1 = arith.mulf %0, %0 : vector<8x128xf32>
    %cst = arith.constant dense<0.000000e+00> : vector<8xf32>
    %2 = vector.multi_reduction <add>, %1, %cst [1] : vector<8x128xf32> to vector<8xf32>
    %3 = vector.shape_cast %2 : vector<8xf32> to vector<8x1xf32>
    %cst_1 = arith.constant 1.000000e-24 : f32
    %4 = vector.broadcast %cst_1 : f32 to vector<8x1xf32>
    %5 = arith.maximumf %3, %4 : vector<8x1xf32>
    %6 = math.rsqrt %5 : vector<8x1xf32>
    %7 = vector.broadcast %6 : vector<8x1xf32> to vector<8x128xf32>
    %8 = arith.mulf %0, %7 : vector<8x128xf32>
    %c0_2 = arith.constant 0 : index
    %c0_3 = arith.constant 0 : index
    %9 = vector.load %arg2[%c0_2, %c0_3] : memref<8x128xf32, #tpu.memory_space<vmem>>, vector<8x128xf32>
    tpu.vector_store %arg2[%c0_2, %c0_3], %8 {strides = array<i32>} : memref<8x128xf32, #tpu.memory_space<vmem>>, vector<8x128xf32>,
    return
  }
  func.func @transform_0(%arg0: i32) -> (i32, i32) {
    %c0_i32 = arith.constant 0 : i32
    %c0_i32_0 = arith.constant 0 : i32
    %c0_i32_1 = arith.constant 0 : i32
    return %c0_i32, %c0_i32_0 : i32, i32
  }
  func.func @transform_1(%arg0: i32) -> (i32, i32) {
    %c0_i32 = arith.constant 0 : i32
    %c0_i32_0 = arith.constant 0 : i32
    %c0_i32_1 = arith.constant 0 : i32
    return %c0_i32, %c0_i32_0 : i32, i32
  }
}

</mosaic_0001>

<llo_original>
// kernel: tpu_custom_call.1
$region0: #{tpu_custom_call.1}
  #allocation0 [shape = 'u32[]', space=smem, size = 0x4, offset = 0x4, fixed_abs, tag = 'smem constant byte address 0x4 - core index']
  #allocation1 [shape = 'u32[72,128]{1,0:T(1,128)}', space=vmem, size = 0x9000, scoped, tag = 'internal scratch']
  %s0 = inlined_call_operand.hbm [shape: f32[8,128], index: 0, kind: input, shape index: {}]
  %s1 = inlined_call_operand.hbm [shape: f32[8,128], index: 1, kind: output, shape index: {}]
  %s2 = sld [smem:[#allocation0]]
  $region18: #{tpu_custom_call.1} parent=0
    _
  %s4 = ssub.s32 1, %s2
  %s5 = scalar_select 0, %s4, %s2
  $region1: #{tpu_custom_call.1} parent=0
    #allocation2 [shape = 'u8[4096]{0}', space=vmem, size = 0x1000, scoped, tag = 'input window, operand 0, single buffered']
    #allocation3 [shape = 's32[1]{0}', space=sflag, size = 0x4, scoped, tag = 'scoped memory for tpu_custom_call.1']
    #allocation4 [shape = 's32[1]{0}', space=sflag, size = 0x4, scoped, tag = 'scoped memory for tpu_custom_call.1']
    #allocation5 [shape = 'u8[4096]{0}', space=vmem, size = 0x1000, scoped, tag = 'output window, operand 0, single buffered']
    %6 = vsyncpa [#allocation3], 0
    %7 = vsyncpa [#allocation4], 0
    // Predicated region
    $region2: #{tpu_custom_call.1} parent=1 // pred_check
      _
    $region3: #{tpu_custom_call.1} parent=1 // pred_check_branch
      %9 = sbr.rel (0) target = $region5
    $region4: #{tpu_custom_call.1} parent=1 // pred_region
      %11 = vsyncadd [#allocation3], 0
      %s13 = sshll.u32 %s0, 4
      %s14 = int_to_ptr.hbm [resolvable:$true] %s13
      %s15 = sshll.u32 [#allocation2], 4
      %s16 = int_to_ptr.vmem [resolvable:$true] %s15
      %18 = dma.hbm_to_vmem [thread:$0]  %s14, 128, %s16, [#allocation3]
    $region5: #{tpu_custom_call.1} parent=1 // pred_fallthru
      _
    // Predicated region
    $region6: #{tpu_custom_call.1} parent=1 // pred_check
      _
    $region7: #{tpu_custom_call.1} parent=1 // pred_check_branch
      %20 = sbr.rel (0) target = $region9
    $region8: #{tpu_custom_call.1} parent=1 // pred_region
      %22 = dma.done [#allocation3], 128
    $region9: #{tpu_custom_call.1} parent=1 // pred_fallthru
      _
    %v23 = vld [vmem:[#allocation2] sm:$0xff]
    %v24 = vmul.f32 %v23, %v23
    %25 = vadd.xlane.f32.xlu0 %v24
    %v26 = vpop.xlane.xlu0 %25
    %v27 = vmax.f32 %v26, 1e-24
    %v28 = vrsqrt.pop %v27
    %v29 = vmul.f32 %v28, %v27
    %v30 = vmul.f32 %v29, %v28
    %v31 = vmul.f32 0.5, %v30
    %v32 = vsub.f32 1.5, %v31
    %v33 = vmul.f32 %v28, %v32
    %vm34 = vweird.f32 %v27
    %vm35 = vweird.f32 %v28
    %vm36 = vmor %vm34, %vm35
    %v37 = vsel %vm36, %v28, %v33
    %v38 = vmul.f32 %v23, %v37
    %39 = vst [vmem:[#allocation5] sm:$0xff] %v38
    // Predicated region
    $region10: #{tpu_custom_call.1} parent=1 // pred_check
      _
    $region11: #{tpu_custom_call.1} parent=1 // pred_check_branch
      %41 = sbr.rel (0) target = $region13
    $region12: #{tpu_custom_call.1} parent=1 // pred_region
      %43 = vsyncadd [#allocation4], 0
      %s45 = sshll.u32 [#allocation5], 4
      %s46 = int_to_ptr.vmem [resolvable:$true] %s45
      %s47 = sshll.u32 %s1, 4
      %s48 = int_to_ptr.hbm [resolvable:$true] %s47
      %50 = dma.vmem_to_hbm [thread:$0]  %s46, 128, %s48, [#allocation4]
    $region13: #{tpu_custom_call.1} parent=1 // pred_fallthru
      _
    // Predicated region
    $region14: #{tpu_custom_call.1} parent=1 // pred_check
      _
    $region15: #{tpu_custom_call.1} parent=1 // pred_check_branch
      %52 = sbr.rel (0) target = $region17
    $region16: #{tpu_custom_call.1} parent=1 // pred_region
      %54 = dma.done [#allocation4], 128
    $region17: #{tpu_custom_call.1} parent=1 // pred_fallthru
      _
    %55 = vsyncpa [#allocation3], 1
    %56 = vsyncpa [#allocation4], 1

</llo_original>
